<compile_context>
chip_gen: v6e
topology: v6e:2x2x1
jax: 0.10.0
libtpu: 0.0.40
codegen_flags: <defaults>
</compile_context>

<pallas_src>
import jax
import jax.numpy as jnp
from jax.experimental import pallas as pl
from jax.experimental.pallas import tpu as pltpu


def _round_up(x: int, m: int) -> int:
    return ((x + m - 1) // m) * m


def _swish_kernel(x_ref, o_ref):
    # out = x * sigmoid(x).  Compute in f32 (full-precision path for narrow
    # dtypes), using the identity sigmoid(x) = 0.5 * (1 + tanh(x / 2)) so the
    # whole activation costs a single transcendental per element.
    x = x_ref[...].astype(jnp.float32)
    o_ref[...] = (0.5 * x * (1.0 + jnp.tanh(0.5 * x))).astype(o_ref.dtype)


_TARGET_BLOCK_BYTES = 2 * 1024 * 1024  # ~2 MiB/block; 4x (in+out, double-buffered) = 8 MiB


def _swish_2d(x2d: jax.Array) -> jax.Array:
    """Run the swish kernel on a lane-dense (rows, cols) slab (cols % 128 == 0)."""
    rows, cols = x2d.shape
    itemsize = x2d.dtype.itemsize
    # Minimum sublane multiple per dtype: f32 -> 8, bf16 -> 16, int8/fp8 -> 32.
    sub = max(8, 32 // itemsize)

    # Row-tile targeting ~2 MiB blocks, dtype-scaled, multiple of `sub`.
    rt = max(sub, (_TARGET_BLOCK_BYTES // (cols * itemsize)) // sub * sub)
    if rt >= rows:
        if rows > sub:
            # Split into >= 2 grid steps so the "parallel" axis can shard
            # across the two TensorCores on v7x.
            rt = min(_round_up(pl.cdiv(rows, 2), sub), rows)
        else:
            # Tiny array: take the full row extent (always a legal block dim).
            rt = rows
    grid = (pl.cdiv(rows, rt),)

    total = rows * cols
    cost = pl.CostEstimate(
        flops=4 * total,              # mul, add, mul, mul per element
        transcendentals=total,        # one tanh per element
        bytes_accessed=2 * total * itemsize,
    )

    return pl.pallas_call(
        _swish_kernel,
        out_shape=jax.ShapeDtypeStruct((rows, cols), x2d.dtype),
        grid_spec=pltpu.PrefetchScalarGridSpec(
            num_scalar_prefetch=0,
            grid=grid,
            in_specs=[pl.BlockSpec((rt, cols), lambda i: (i, 0))],
            out_specs=pl.BlockSpec((rt, cols), lambda i: (i, 0)),
        ),
        compiler_params=pltpu.CompilerParams(
            dimension_semantics=("parallel",),
        ),
        cost_estimate=cost,
    )(x2d)


def swish_pallas(x: jax.Array) -> jax.Array:
    """Swish (x * sigmoid(x)) for an arbitrary-shaped array via a Pallas TPU kernel."""
    orig_shape = x.shape
    total = x.size
    if total == 0:
        return x

    # Common NN case: pick a lane-dense column width (multiple of 128) that
    # divides the element count so the reshape is a free contiguous view
    # (no pad of the input, no slice of the output).
    for c in (1024, 512, 256, 128):
        if total % c == 0:
            out2d = _swish_2d(x.reshape(total // c, c))
            return out2d.reshape(orig_shape)

    # Fallback (total not divisible by 128, rare for NN activations): pad the
    # flat view up to a 128-lane multiple.  Costs one extra copy of input and
    # output; zero padding is safe since swish(0) == 0.
    cols = 128
    rows = pl.cdiv(total, cols)
    padded_total = rows * cols
    flat = jnp.pad(x.reshape(-1), (0, padded_total - total))
    out2d = _swish_2d(flat.reshape(rows, cols))
    return out2d.reshape(-1)[:total].reshape(orig_shape)


if __name__ == "__main__":
    key = jax.random.PRNGKey(0)
    # Small deterministic input consistent with an activation module.
    B, C, H, W = 2, 4, 16, 16
    x = jax.random.normal(key, (B, C, H, W), dtype=jnp.float32)

    y = jax.block_until_ready(swish_pallas(x))

    # Reference: torch's `inputs * inputs.sigmoid()`.
    y_ref = x * jax.nn.sigmoid(x)
    assert y.shape == x.shape
    assert y.dtype == x.dtype
    assert jnp.allclose(y, y_ref, rtol=1e-6, atol=1e-6)

    # Also exercise the unaligned fallback path once.
    x_odd = jax.random.normal(jax.random.PRNGKey(1), (3, 5, 7), dtype=jnp.float32)
    y_odd = jax.block_until_ready(swish_pallas(x_odd))
    assert jnp.allclose(y_odd, x_odd * jax.nn.sigmoid(x_odd), rtol=1e-6, atol=1e-6)

    print("KERNEL_OK")
</pallas_src>

<mosaic_0001>
module attributes {stable_mosaic.version = 11 : i64} {
  func.func @_swish_kernel(%arg0: i32, %arg1: memref<2x1024xf32, #tpu.memory_space<vmem>>, %arg2: memref<2x1024xf32, #tpu.memory_space<vmem>>) attributes {dimension_semantics = [#tpu.dimension_semantics<parallel>], iteration_bounds = array<i64: 1>, scalar_prefetch = 0 : i64, scratch_operands = 0 : i64, tpu.core_type = #tpu.core_type<tc>, window_params = [{transform_indices = @transform_0, window_bounds = array<i64: 2, 1024>}, {transform_indices = @transform_1, window_bounds = array<i64: 2, 1024>}]} {
    %c0 = arith.constant 0 : index
    %c0_0 = arith.constant 0 : index
    %0 = vector.load %arg1[%c0, %c0_0] : memref<2x1024xf32, #tpu.memory_space<vmem>>, vector<2x1024xf32>
    %cst = arith.constant 5.000000e-01 : f32
    %1 = vector.broadcast %cst : f32 to vector<2x1024xf32>
    %2 = arith.mulf %1, %0 : vector<2x1024xf32>
    %cst_1 = arith.constant 5.000000e-01 : f32
    %3 = vector.broadcast %cst_1 : f32 to vector<2x1024xf32>
    %4 = arith.mulf %3, %0 : vector<2x1024xf32>
    %5 = math.tanh %4 : vector<2x1024xf32>
    %cst_2 = arith.constant 1.000000e+00 : f32
    %6 = vector.broadcast %cst_2 : f32 to vector<2x1024xf32>
    %7 = arith.addf %6, %5 : vector<2x1024xf32>
    %8 = arith.mulf %2, %7 : vector<2x1024xf32>
    %c0_3 = arith.constant 0 : index
    %c0_4 = arith.constant 0 : index
    %9 = vector.load %arg2[%c0_3, %c0_4] : memref<2x1024xf32, #tpu.memory_space<vmem>>, vector<2x1024xf32>
    tpu.vector_store %arg2[%c0_3, %c0_4], %8 {strides = array<i32>} : memref<2x1024xf32, #tpu.memory_space<vmem>>, vector<2x1024xf32>,
    return
  }
  func.func @transform_0(%arg0: i32) -> (i32, i32) {
    %c0_i32 = arith.constant 0 : i32
    %c0_i32_0 = arith.constant 0 : i32
    return %arg0, %c0_i32 : i32, i32
  }
  func.func @transform_1(%arg0: i32) -> (i32, i32) {
    %c0_i32 = arith.constant 0 : i32
    %c0_i32_0 = arith.constant 0 : i32
    return %arg0, %c0_i32 : i32, i32
  }
}

</mosaic_0001>

<llo_original>
// kernel: tpu_custom_call.1
$region0: #{tpu_custom_call.1}
  #allocation0 [shape = 'u32[]', space=smem, size = 0x4, offset = 0x4, fixed_abs, tag = 'smem constant byte address 0x4 - core index']
  #allocation1 [shape = 'u32[144,128]{1,0:T(1,128)}', space=vmem, size = 0x12000, scoped, tag = 'internal scratch']
  %s0 = inlined_call_operand.hbm [shape: f32[2,1024], index: 0, kind: input, shape index: {}]
  %s1 = inlined_call_operand.hbm [shape: f32[2,1024], index: 1, kind: output, shape index: {}]
  %s2 = sld [smem:[#allocation0]]
  $region18: #{tpu_custom_call.1} parent=0
    _
  %s4 = ssub.s32 1, %s2
  %s5 = scalar_select 0, %s4, %s2
  $region1: #{tpu_custom_call.1} parent=0
    #allocation2 [shape = 'u8[8192]{0}', space=vmem, size = 0x2000, scoped, tag = 'input window, operand 0, single buffered']
    #allocation3 [shape = 's32[1]{0}', space=sflag, size = 0x4, scoped, tag = 'scoped memory for tpu_custom_call.1']
    #allocation4 [shape = 's32[1]{0}', space=sflag, size = 0x4, scoped, tag = 'scoped memory for tpu_custom_call.1']
    #allocation5 [shape = 'u8[8192]{0}', space=vmem, size = 0x2000, scoped, tag = 'output window, operand 0, single buffered']
    %6 = vsyncpa [#allocation3], 0
    %7 = vsyncpa [#allocation4], 0
    // Predicated region
    $region2: #{tpu_custom_call.1} parent=1 // pred_check
      _
    $region3: #{tpu_custom_call.1} parent=1 // pred_check_branch
      %9 = sbr.rel (0) target = $region5
    $region4: #{tpu_custom_call.1} parent=1 // pred_region
      %s11 = ssub.s32 256, 256
      %12 = vsyncadd [#allocation3], %s11
      %s14 = sshll.u32 [#allocation2], 4
      %s15 = int_to_ptr.vmem [resolvable:$true] %s14
      %17 = dma.hbm_to_vmem [thread:$0]  %s0, 256, %s15, [#allocation3]
    $region5: #{tpu_custom_call.1} parent=1 // pred_fallthru
      _
    // Predicated region
    $region6: #{tpu_custom_call.1} parent=1 // pred_check
      _
    $region7: #{tpu_custom_call.1} parent=1 // pred_check_branch
      %19 = sbr.rel (0) target = $region9
    $region8: #{tpu_custom_call.1} parent=1 // pred_region
      %20 = dma.done [#allocation3], 256
    $region9: #{tpu_custom_call.1} parent=1 // pred_fallthru
      _
    %v21 = vld [vmem:[#allocation2] sm:$0xff]
    %v22 = vld [vmem:[#allocation2 + $0x8] sm:$0xff]
    %v23 = vmul.f32 %v21, 0.5
    %v24 = vmul.f32 %v22, 0.5
    %v25 = vtanh.pop %v23
    %v26 = vtanh.pop %v24
    %v27 = vadd.f32 %v25, 1.0
    %v28 = vadd.f32 %v26, 1.0
    %v29 = vmul.f32 %v23, %v27
    %v30 = vmul.f32 %v24, %v28
    %31 = vst [vmem:[#allocation5] sm:$0xff] %v29
    %32 = vst [vmem:[#allocation5 + $0x8] sm:$0xff] %v30
    // Predicated region
    $region10: #{tpu_custom_call.1} parent=1 // pred_check
      _
    $region11: #{tpu_custom_call.1} parent=1 // pred_check_branch
      %34 = sbr.rel (0) target = $region13
    $region12: #{tpu_custom_call.1} parent=1 // pred_region
      %s36 = ssub.s32 256, 256
      %37 = vsyncadd [#allocation4], %s36
      %s39 = sshll.u32 [#allocation5], 4
      %s40 = int_to_ptr.vmem [resolvable:$true] %s39
      %42 = dma.vmem_to_hbm [thread:$0]  %s40, 256, %s1, [#allocation4]
    $region13: #{tpu_custom_call.1} parent=1 // pred_fallthru
      _
    // Predicated region
    $region14: #{tpu_custom_call.1} parent=1 // pred_check
      _
    $region15: #{tpu_custom_call.1} parent=1 // pred_check_branch
      %44 = sbr.rel (0) target = $region17
    $region16: #{tpu_custom_call.1} parent=1 // pred_region
      %45 = dma.done [#allocation4], 256
    $region17: #{tpu_custom_call.1} parent=1 // pred_fallthru
      _
    %46 = vsyncpa [#allocation3], 1
    %47 = vsyncpa [#allocation4], 1

</llo_original>
